<compile_context>
chip_gen: v5e
topology: v5e:2x2
jax: 0.10.0
libtpu: 0.0.40
codegen_flags: <defaults>
</compile_context>

<pallas_src>
import functools

import jax
import jax.numpy as jnp
from jax import lax
from jax.experimental import pallas as pl
from jax.experimental.pallas import tpu as pltpu

MARGIN = 1.0
EPS = 1e-6  # torch F.pairwise_distance default eps (added elementwise to the diff)


def _tensorcores_per_device() -> int:
    """2 only on chips exposing 2 TensorCores per JAX device (v4/v5p/v7x)."""
    try:
        kind = jax.devices()[0].device_kind.lower()
    except Exception:
        return 1
    if any(tag in kind for tag in ("v4", "v5p", "v7", "7x")):
        return 2
    return 1


def _wpdc_kernel(fl_ref, fr_ref, lab_ref, out_ref, *,
                 n_rows, tile_rows, tiles_per_split, margin):
    c = pl.program_id(0)          # split ("core") index
    j = pl.program_id(1)          # tile index within this split

    # The (8, tile_rows) output block is the accumulator (resident across j).
    @pl.when(j == 0)
    def _():
        out_ref[...] = jnp.zeros_like(out_ref)

    # (TN, D) blocks; transpose on the idle XLU so rows land on the lane axis.
    fl = fl_ref[...].astype(jnp.float32).T        # (D, TN)
    fr = fr_ref[...].astype(jnp.float32).T        # (D, TN)
    lab = lab_ref[...].astype(jnp.float32)        # (1, TN)  lane-dense

    # F.pairwise_distance(x1, x2, p=2, keepdim=True) == ||x1 - x2 + eps||_2
    diff = fl - fr + EPS                          # (D, TN)   VALU
    dsq = diff * diff                             # (D, TN)
    d2 = jnp.sum(dsq, axis=0, keepdims=True)      # (1, TN)   sublane reduce
    dist = jnp.sqrt(d2)                           # (1, TN)   EUP (neg branch only)

    # 0.5*y*dist^2 + (1-y)*clamp(margin - dist, 0)^2 ; dist^2 == d2 exactly.
    pos = (0.5 * lab) * d2
    hinge = jnp.maximum(margin - dist, 0.0)
    neg = (1.0 - lab) * (hinge * hinge)
    loss = pos + neg                              # (1, TN)   lane-dense

    logical_tile = c * tiles_per_split + j
    needs_mask = (logical_tile + 1) * tile_rows > n_rows

    # Steady-state tiles: no mask work at all.
    @pl.when(jnp.logical_not(needs_mask))
    def _():
        out_ref[0:1, :] = out_ref[0:1, :] + loss

    # Boundary tile (ragged tail) or clamped-duplicate tile: select valid rows.
    @pl.when(needs_mask)
    def _():
        lane = lax.broadcasted_iota(jnp.int32, loss.shape, 1)
        row = logical_tile * tile_rows + lane
        out_ref[0:1, :] = out_ref[0:1, :] + jnp.where(row < n_rows, loss, 0.0)


def wpdc_loss_3(feature_l, feature_r, label, *, margin=MARGIN, tile_rows=8192):
    """Pallas TPU implementation of WPDCLoss_3.forward (opt_style='resample')."""
    n, d_feat = feature_l.shape
    assert feature_r.shape == (n, d_feat)

    # Lane-dense labels: (N,1)/(N,) -> (1, N).  Cheap reshape, big VMEM/DMA win.
    label_row = jnp.reshape(label, (1, n)).astype(jnp.float32)

    if n <= tile_rows:
        tn = n                                   # single full block
        num_tiles = 1
    else:
        tn = max(128, (int(tile_rows) // 128) * 128)   # lane/sublane aligned
        num_tiles = pl.cdiv(n, tn)

    num_splits = max(1, min(_tensorcores_per_device(), num_tiles))
    tiles_per_split = pl.cdiv(num_tiles, num_splits)

    def feat_map(c, j):
        # Clamp so padded (duplicate) tiles stay in-bounds; they are fully
        # masked inside the kernel.
        t = jnp.minimum(c * tiles_per_split + j, num_tiles - 1)
        return (t, 0)

    def lab_map(c, j):
        t = jnp.minimum(c * tiles_per_split + j, num_tiles - 1)
        return (0, t)

    kernel = functools.partial(
        _wpdc_kernel, n_rows=n, tile_rows=tn,
        tiles_per_split=tiles_per_split, margin=float(margin))

    cost = pl.CostEstimate(
        flops=(4 * d_feat + 10) * n,
        transcendentals=n,
        bytes_accessed=(2 * d_feat + 1) * 4 * n + num_splits * 8 * tn * 4)

    out = pl.pallas_call(
        kernel,
        out_shape=jax.ShapeDtypeStruct((num_splits * 8, tn), jnp.float32),
        grid=(num_splits, tiles_per_split),
        in_specs=[
            pl.BlockSpec((tn, d_feat), feat_map),
            pl.BlockSpec((tn, d_feat), feat_map),
            pl.BlockSpec((1, tn), lab_map),
        ],
        out_specs=pl.BlockSpec((8, tn), lambda c, j: (c, 0)),
        compiler_params=pltpu.CompilerParams(
            dimension_semantics=("parallel", "arbitrary"),
            vmem_limit_bytes=48 * 1024 * 1024),
        cost_estimate=cost,
    )(feature_l, feature_r, label_row)

    # Per-lane partial sums live in row 0 of each split's 8-row slab; the rest
    # is zero, so a single XLA reduction finishes the mean.
    return jnp.sum(out) / n


def _reference(feature_l, feature_r, label, margin=MARGIN):
    diff = feature_l - feature_r + EPS
    dist = jnp.sqrt(jnp.sum(diff * diff, axis=-1, keepdims=True))
    loss = (0.5 * label * dist ** 2
            + (1.0 - label) * jnp.maximum(margin - dist, 0.0) ** 2)
    return jnp.mean(loss)


if __name__ == "__main__":
    key = jax.random.PRNGKey(0)

    # Test 1: module-spec shapes — batch N=8, 62-d params.
    N, D = 8, 62
    k1, k2, k3, k4 = jax.random.split(key, 4)
    feature_l = jax.random.normal(k1, (N, D), dtype=jnp.float32)
    feature_r = jax.random.normal(k2, (N, D), dtype=jnp.float32)
    label = (jax.random.uniform(k3, (N, 1)) > 0.5).astype(jnp.float32)

    loss = jax.block_until_ready(wpdc_loss_3(feature_l, feature_r, label))
    ref = _reference(feature_l, feature_r, label)
    assert jnp.allclose(loss, ref, rtol=1e-5, atol=1e-6), (loss, ref)

    # Test 2: exercise multi-tile pipelining, ragged tail and split masking.
    N2 = 300
    ka, kb, kc = jax.random.split(k4, 3)
    fl2 = jax.random.normal(ka, (N2, D), dtype=jnp.float32)
    fr2 = jax.random.normal(kb, (N2, D), dtype=jnp.float32)
    lab2 = (jax.random.uniform(kc, (N2, 1)) > 0.5).astype(jnp.float32)

    loss2 = jax.block_until_ready(wpdc_loss_3(fl2, fr2, lab2, tile_rows=128))
    ref2 = _reference(fl2, fr2, lab2)
    assert jnp.allclose(loss2, ref2, rtol=1e-5, atol=1e-6), (loss2, ref2)

    print("KERNEL_OK")
</pallas_src>

<mosaic_0001>
module attributes {stable_mosaic.version = 11 : i64} {
  func.func @_wpdc_kernel(%arg0: i32, %arg1: i32, %arg2: memref<8x62xf32, #tpu.memory_space<vmem>>, %arg3: memref<8x62xf32, #tpu.memory_space<vmem>>, %arg4: memref<1x8xf32, #tpu.memory_space<vmem>>, %arg5: memref<8x8xf32, #tpu.memory_space<vmem>>) attributes {dimension_semantics = [#tpu.dimension_semantics<parallel>, #tpu.dimension_semantics<arbitrary>], iteration_bounds = array<i64: 1, 1>, scalar_prefetch = 0 : i64, scratch_operands = 0 : i64, tpu.core_type = #tpu.core_type<tc>, window_params = [{transform_indices = @transform_0, window_bounds = array<i64: 8, 62>}, {transform_indices = @transform_1, window_bounds = array<i64: 8, 62>}, {transform_indices = @transform_2, window_bounds = array<i64: 1, 8>}, {transform_indices = @transform_3, window_bounds = array<i64: 8, 8>}]} {
    %c0_i32 = arith.constant 0 : i32
    %0 = arith.cmpi eq, %arg1, %c0_i32 : i32
    %1 = arith.extui %0 : i1 to i32
    %c0_i32_0 = arith.constant 0 : i32
    %2 = arith.cmpi ne, %1, %c0_i32_0 : i32
    scf.if %2 {
      %cst_15 = arith.constant 0.000000e+00 : f32
      %37 = vector.broadcast %cst_15 : f32 to vector<8x8xf32>
      %c0_16 = arith.constant 0 : index
      %c0_17 = arith.constant 0 : index
      %38 = vector.load %arg5[%c0_16, %c0_17] : memref<8x8xf32, #tpu.memory_space<vmem>>, vector<8x8xf32>
      tpu.vector_store %arg5[%c0_16, %c0_17], %37 {strides = array<i32>} : memref<8x8xf32, #tpu.memory_space<vmem>>, vector<8x8xf32>,
    } else {
    }
    %c0 = arith.constant 0 : index
    %c0_1 = arith.constant 0 : index
    %3 = vector.load %arg2[%c0, %c0_1] : memref<8x62xf32, #tpu.memory_space<vmem>>, vector<8x62xf32>
    %4 = tpu.transpose %3, [1, 0] : vector<8x62xf32> -> vector<62x8xf32>
    %c0_2 = arith.constant 0 : index
    %c0_3 = arith.constant 0 : index
    %5 = vector.load %arg3[%c0_2, %c0_3] : memref<8x62xf32, #tpu.memory_space<vmem>>, vector<8x62xf32>
    %6 = tpu.transpose %5, [1, 0] : vector<8x62xf32> -> vector<62x8xf32>
    %c0_4 = arith.constant 0 : index
    %c0_5 = arith.constant 0 : index
    %7 = vector.load %arg4[%c0_4, %c0_5] : memref<1x8xf32, #tpu.memory_space<vmem>>, vector<1x8xf32>
    %8 = arith.subf %4, %6 : vector<62x8xf32>
    %cst = arith.constant 9.99999997E-7 : f32
    %9 = vector.broadcast %cst : f32 to vector<62x8xf32>
    %10 = arith.addf %8, %9 : vector<62x8xf32>
    %11 = arith.mulf %10, %10 : vector<62x8xf32>
    %cst_6 = arith.constant dense<0.000000e+00> : vector<8xf32>
    %12 = vector.multi_reduction <add>, %11, %cst_6 [0] : vector<62x8xf32> to vector<8xf32>
    %13 = vector.shape_cast %12 : vector<8xf32> to vector<1x8xf32>
    %14 = math.sqrt %13 : vector<1x8xf32>
    %cst_7 = arith.constant 5.000000e-01 : f32
    %15 = vector.broadcast %cst_7 : f32 to vector<1x8xf32>
    %16 = arith.mulf %15, %7 : vector<1x8xf32>
    %17 = arith.mulf %16, %13 : vector<1x8xf32>
    %cst_8 = arith.constant 1.000000e+00 : f32
    %18 = vector.broadcast %cst_8 : f32 to vector<1x8xf32>
    %19 = arith.subf %18, %14 : vector<1x8xf32>
    %cst_9 = arith.constant 0.000000e+00 : f32
    %20 = vector.broadcast %cst_9 : f32 to vector<1x8xf32>
    %21 = arith.maximumf %19, %20 : vector<1x8xf32>
    %cst_10 = arith.constant 1.000000e+00 : f32
    %22 = vector.broadcast %cst_10 : f32 to vector<1x8xf32>
    %23 = arith.subf %22, %7 : vector<1x8xf32>
    %24 = arith.mulf %21, %21 : vector<1x8xf32>
    %25 = arith.mulf %23, %24 : vector<1x8xf32>
    %26 = arith.addf %17, %25 : vector<1x8xf32>
    %c1_i32 = arith.constant 1 : i32
    %27 = arith.muli %arg0, %c1_i32 : i32
    %28 = arith.addi %27, %arg1 : i32
    %c1_i32_11 = arith.constant 1 : i32
    %29 = arith.addi %28, %c1_i32_11 : i32
    %c8_i32 = arith.constant 8 : i32
    %30 = arith.muli %29, %c8_i32 : i32
    %c8_i32_12 = arith.constant 8 : i32
    %31 = arith.cmpi sgt, %30, %c8_i32_12 : i32
    %true = arith.constant true
    %32 = arith.xori %31, %true : i1
    %33 = arith.extui %32 : i1 to i32
    %c0_i32_13 = arith.constant 0 : i32
    %34 = arith.cmpi ne, %33, %c0_i32_13 : i32
    scf.if %34 {
      %c0_15 = arith.constant 0 : index
      %c0_16 = arith.constant 0 : index
      %37 = vector.load %arg5[%c0_15, %c0_16] : memref<8x8xf32, #tpu.memory_space<vmem>>, vector<1x8xf32>
      %38 = arith.addf %37, %26 : vector<1x8xf32>
      %c0_17 = arith.constant 0 : index
      %c0_18 = arith.constant 0 : index
      %39 = vector.load %arg5[%c0_17, %c0_18] : memref<8x8xf32, #tpu.memory_space<vmem>>, vector<1x8xf32>
      tpu.vector_store %arg5[%c0_17, %c0_18], %38 {strides = array<i32>} : memref<8x8xf32, #tpu.memory_space<vmem>>, vector<1x8xf32>,
    } else {
    }
    %35 = arith.extui %31 : i1 to i32
    %c0_i32_14 = arith.constant 0 : i32
    %36 = arith.cmpi ne, %35, %c0_i32_14 : i32
    scf.if %36 {
      %37 = tpu.iota {dimensions = array<i32: 1>} : vector<1x8xi32>
      %c8_i32_15 = arith.constant 8 : i32
      %38 = arith.muli %28, %c8_i32_15 : i32
      %39 = vector.broadcast %38 : i32 to vector<1x8xi32>
      %40 = arith.addi %39, %37 : vector<1x8xi32>
      %c0_16 = arith.constant 0 : index
      %c0_17 = arith.constant 0 : index
      %41 = vector.load %arg5[%c0_16, %c0_17] : memref<8x8xf32, #tpu.memory_space<vmem>>, vector<1x8xf32>
      %c8_i32_18 = arith.constant 8 : i32
      %42 = vector.broadcast %c8_i32_18 : i32 to vector<1x8xi32>
      %43 = arith.cmpi slt, %40, %42 : vector<1x8xi32>
      %cst_19 = arith.constant 0.000000e+00 : f32
      %44 = vector.broadcast %cst_19 : f32 to vector<1x8xf32>
      %45 = arith.select %43, %26, %44 : vector<1x8xi1>, vector<1x8xf32>
      %46 = arith.addf %41, %45 : vector<1x8xf32>
      %c0_20 = arith.constant 0 : index
      %c0_21 = arith.constant 0 : index
      %47 = vector.load %arg5[%c0_20, %c0_21] : memref<8x8xf32, #tpu.memory_space<vmem>>, vector<1x8xf32>
      tpu.vector_store %arg5[%c0_20, %c0_21], %46 {strides = array<i32>} : memref<8x8xf32, #tpu.memory_space<vmem>>, vector<1x8xf32>,
    } else {
    }
    return
  }
  func.func @transform_0(%arg0: i32, %arg1: i32) -> (i32, i32) {
    %c1_i32 = arith.constant 1 : i32
    %0 = arith.muli %arg0, %c1_i32 : i32
    %1 = arith.addi %0, %arg1 : i32
    %c0_i32 = arith.constant 0 : i32
    %2 = arith.minsi %1, %c0_i32 : i32
    %c0_i32_0 = arith.constant 0 : i32
    %c0_i32_1 = arith.constant 0 : i32
    return %2, %c0_i32_0 : i32, i32
  }
  func.func @transform_1(%arg0: i32, %arg1: i32) -> (i32, i32) {
    %c1_i32 = arith.constant 1 : i32
    %0 = arith.muli %arg0, %c1_i32 : i32
    %1 = arith.addi %0, %arg1 : i32
    %c0_i32 = arith.constant 0 : i32
    %2 = arith.minsi %1, %c0_i32 : i32
    %c0_i32_0 = arith.constant 0 : i32
    %c0_i32_1 = arith.constant 0 : i32
    return %2, %c0_i32_0 : i32, i32
  }
  func.func @transform_2(%arg0: i32, %arg1: i32) -> (i32, i32) {
    %c1_i32 = arith.constant 1 : i32
    %0 = arith.muli %arg0, %c1_i32 : i32
    %1 = arith.addi %0, %arg1 : i32
    %c0_i32 = arith.constant 0 : i32
    %2 = arith.minsi %1, %c0_i32 : i32
    %c0_i32_0 = arith.constant 0 : i32
    %c0_i32_1 = arith.constant 0 : i32
    return %c0_i32_0, %2 : i32, i32
  }
  func.func @transform_3(%arg0: i32, %arg1: i32) -> (i32, i32) {
    %c0_i32 = arith.constant 0 : i32
    %c0_i32_0 = arith.constant 0 : i32
    return %arg0, %c0_i32 : i32, i32
  }
}

</mosaic_0001>

<llo_original>
// kernel: tpu_custom_call.1
$region0: #{tpu_custom_call.1}
  #allocation0 [shape = 'u32[]', space=smem, size = 0x4, offset = 0x4, fixed_abs, tag = 'smem constant byte address 0x4 - core index']
  #allocation1 [shape = 'u32[72,128]{1,0:T(1,128)}', space=vmem, size = 0x9000, scoped, tag = 'internal scratch']
  %s0 = inlined_call_operand.hbm [shape: f32[8,62], index: 0, kind: input, shape index: {}]
  %s1 = inlined_call_operand.hbm [shape: f32[8,62], index: 1, kind: input, shape index: {}]
  %s2 = inlined_call_operand.vmem [shape: f32[1,8], index: 2, kind: input, shape index: {}]
  %s3 = inlined_call_operand.hbm [shape: f32[8,8], index: 3, kind: output, shape index: {}]
  %s4 = sld [smem:[#allocation0]]
  $region42: #{tpu_custom_call.1} parent=0
    _
  %s6 = ssub.s32 1, %s4
  %s7 = scalar_select 0, %s6, %s4
  $region1: #{tpu_custom_call.1} parent=0
    #allocation2 [shape = 'u8[4096]{0}', space=vmem, size = 0x1000, scoped, tag = 'input window, operand 0, single buffered']
    #allocation3 [shape = 's32[1]{0}', space=sflag, size = 0x4, scoped, tag = 'scoped memory for tpu_custom_call.1']
    #allocation4 [shape = 's32[1]{0}', space=sflag, size = 0x4, scoped, tag = 'scoped memory for tpu_custom_call.1']
    #allocation5 [shape = 'u8[4096]{0}', space=vmem, size = 0x1000, scoped, tag = 'input window, operand 1, single buffered']
    #allocation6 [shape = 's32[1]{0}', space=sflag, size = 0x4, scoped, tag = 'scoped memory for tpu_custom_call.1']
    #allocation7 [shape = 'u8[4096]{0}', space=vmem, size = 0x1000, scoped, tag = 'output window, operand 0, single buffered']
    %8 = vsyncpa [#allocation3], 0
    %9 = vsyncpa [#allocation6], 0
    %10 = vsyncpa [#allocation4], 0
    // Predicated region
    $region2: #{tpu_custom_call.1} parent=1 // pred_check
      _
    $region3: #{tpu_custom_call.1} parent=1 // pred_check_branch
      %12 = sbr.rel (0) target = $region5
    $region4: #{tpu_custom_call.1} parent=1 // pred_region
      %s13 = sadd.s32 0, 0
      %p14 = scmp.lt.s32.totalorder %s13, 0
      %s15 = scalar_select %p14, %s13, 0
      %17 = vsyncadd [#allocation3], 0
      %s18 = smul.addr %s15, 8
      %s19 = scalar_lea.hbm %s0, %s18
      %s21 = sshll.u32 %s19, 4
      %s22 = int_to_ptr.hbm [resolvable:$true] %s21
      %s23 = sshll.u32 [#allocation2], 4
      %s24 = int_to_ptr.vmem [resolvable:$true] %s23
      %26 = dma.hbm_to_vmem [thread:$0]  %s22, 128, %s24, [#allocation3]
    $region5: #{tpu_custom_call.1} parent=1 // pred_fallthru
      _
    // Predicated region
    $region6: #{tpu_custom_call.1} parent=1 // pred_check
      _
    $region7: #{tpu_custom_call.1} parent=1 // pred_check_branch
      %28 = sbr.rel (0) target = $region9
    $region8: #{tpu_custom_call.1} parent=1 // pred_region
      %s29 = sadd.s32 0, 0
      %p30 = scmp.lt.s32.totalorder %s29, 0
      %s31 = scalar_select %p30, %s29, 0
      %33 = vsyncadd [#allocation6], 0
      %s34 = smul.addr %s31, 8
      %s35 = scalar_lea.hbm %s1, %s34
      %s37 = sshll.u32 %s35, 4
      %s38 = int_to_ptr.hbm [resolvable:$true] %s37
      %s39 = sshll.u32 [#allocation5], 4
      %s40 = int_to_ptr.vmem [resolvable:$true] %s39
      %42 = dma.hbm_to_vmem [thread:$0]  %s38, 128, %s40, [#allocation6]
    $region9: #{tpu_custom_call.1} parent=1 // pred_fallthru
      _
    // Predicated region
    $region10: #{tpu_custom_call.1} parent=1 // pred_check
      _
    $region11: #{tpu_custom_call.1} parent=1 // pred_check_branch
      %44 = sbr.rel (0) target = $region13
    $region12: #{tpu_custom_call.1} parent=1 // pred_region
      %s45 = sadd.s32 0, 0
      %p46 = scmp.lt.s32.totalorder %s45, 0
      %s47 = scalar_select %p46, %s45, 0
      %p48 = scmp.lt.s32.totalorder %s47, 0
      %s49 = scalar_select %p48, %s47, 0
      %s50 = scalar_lea.vmem %s2, %s49
      %s51 = sadd.s32 0, 0
      %p52 = scmp.lt.s32.totalorder %s51, 0
      %s53 = scalar_select %p52, %s51, 0
    $region13: #{tpu_custom_call.1} parent=1 // pred_fallthru
      _
    // Predicated region
    $region14: #{tpu_custom_call.1} parent=1 // pred_check
      _
    $region15: #{tpu_custom_call.1} parent=1 // pred_check_branch
      %55 = sbr.rel (0) target = $region17
    $region16: #{tpu_custom_call.1} parent=1 // pred_region
      %57 = dma.done [#allocation3], 128
    $region17: #{tpu_custom_call.1} parent=1 // pred_fallthru
      _
    // Predicated region
    $region18: #{tpu_custom_call.1} parent=1 // pred_check
      _
    $region19: #{tpu_custom_call.1} parent=1 // pred_check_branch
      %59 = sbr.rel (0) target = $region21
    $region20: #{tpu_custom_call.1} parent=1 // pred_region
      %61 = dma.done [#allocation6], 128
    $region21: #{tpu_custom_call.1} parent=1 // pred_fallthru
      _
    %s62 = sadd.s32 0, 0
    %p63 = scmp.lt.s32.totalorder %s62, 0
    %s64 = scalar_select %p63, %s62, 0
    %p65 = scmp.lt.s32.totalorder %s64, 0
    %s66 = scalar_select %p65, %s64, 0
    %s67 = scalar_lea.vmem %s2, %s66
    %s68 = sadd.s32 0, 0
    %p69 = scmp.lt.s32.totalorder %s68, 0
    %s70 = scalar_select %p69, %s68, 0
    %s71 = sadd.s32 0, 0
    %p72 = scmp.lt.s32.totalorder %s71, 0
    %s73 = scalar_select %p72, %s71, 0
    %s74 = sadd.s32 0, 0
    %p75 = scmp.lt.s32.totalorder %s74, 0
    %s76 = scalar_select %p75, %s74, 0
    %p77 = scmp.lt.s32.totalorder %s76, 0
    %s78 = scalar_select %p77, %s76, 0
    %s79 = scalar_lea.vmem %s2, %s78
    %s80 = sadd.s32 0, 0
    %p81 = scmp.lt.s32.totalorder %s80, 0
    %s82 = scalar_select %p81, %s80, 0
    %p83 = scmp.eq.s32.totalorder 0, 0
    // Predicated region
    $region22: #{tpu_custom_call.1} parent=1 // pred_check
      %p84 = pneg %p83
    $region23: #{tpu_custom_call.1} parent=1 // pred_check_branch
      %86 = sbr.rel (%p84) target = $region25
    $region24: #{tpu_custom_call.1} parent=1 // pred_region
      %vm87 = vcmask 64512
      %88 = vst.msk [vmem:[#allocation7] sm:$0xff] %vm87, 0.0
    $region25: #{tpu_custom_call.1} parent=1 // pred_fallthru
      _
    %v89 = vld [vmem:[#allocation2] sm:$0xff]
    %90 = vxpose.xlu0.b32.start [1/16] %v89, 128
    %91 = vxpose.xlu0.b32.cont [2/16] 0.0, 128
    %92 = vxpose.xlu0.b32.cont [3/16] 0.0, 128
    %93 = vxpose.xlu0.b32.cont [4/16] 0.0, 128
    %94 = vxpose.xlu0.b32.cont [5/16] 0.0, 128
    %95 = vxpose.xlu0.b32.cont [6/16] 0.0, 128
    %96 = vxpose.xlu0.b32.cont [7/16] 0.0, 128
    %97 = vxpose.xlu0.b32.cont [8/16] 0.0, 128
    %98 = vxpose.xlu0.b32.cont [9/16] 0.0, 128
    %99 = vxpose.xlu0.b32.cont [10/16] 0.0, 128
    %100 = vxpose.xlu0.b32.cont [11/16] 0.0, 128
    %101 = vxpose.xlu0.b32.cont [12/16] 0.0, 128
    %102 = vxpose.xlu0.b32.cont [13/16] 0.0, 128
    %103 = vxpose.xlu0.b32.cont [14/16] 0.0, 128
    %104 = vxpose.xlu0.b32.cont [15/16] 0.0, 128
    %105 = vxpose.xlu0.b32.end [16/16] 0.0, 128
    %v106 = vpop.trf.xlu0
    %v107 = vpop.trf.xlu0
    %v108 = vpop.trf.xlu0
    %v109 = vpop.trf.xlu0
    %v110 = vpop.trf.xlu0
    %v111 = vpop.trf.xlu0
    %v112 = vpop.trf.xlu0
    %v113 = vpop.trf.xlu0
    %v114 = vpop.trf.xlu0
    %v115 = vpop.trf.xlu0
    %v116 = vpop.trf.xlu0
    %v117 = vpop.trf.xlu0
    %v118 = vpop.trf.xlu0
    %v119 = vpop.trf.xlu0
    %v120 = vpop.trf.xlu0
    %v121 = vpop.trf.xlu0
    %v122 = vld [vmem:[#allocation5] sm:$0xff]
    %123 = vxpose.xlu0.b32.start [1/16] %v122, 128
    %124 = vxpose.xlu0.b32.cont [2/16] 0.0, 128
    %125 = vxpose.xlu0.b32.cont [3/16] 0.0, 128
    %126 = vxpose.xlu0.b32.cont [4/16] 0.0, 128
    %127 = vxpose.xlu0.b32.cont [5/16] 0.0, 128
    %128 = vxpose.xlu0.b32.cont [6/16] 0.0, 128
    %129 = vxpose.xlu0.b32.cont [7/16] 0.0, 128
    %130 = vxpose.xlu0.b32.cont [8/16] 0.0, 128
    %131 = vxpose.xlu0.b32.cont [9/16] 0.0, 128
    %132 = vxpose.xlu0.b32.cont [10/16] 0.0, 128
    %133 = vxpose.xlu0.b32.cont [11/16] 0.0, 128
    %134 = vxpose.xlu0.b32.cont [12/16] 0.0, 128
    %135 = vxpose.xlu0.b32.cont [13/16] 0.0, 128
    %136 = vxpose.xlu0.b32.cont [14/16] 0.0, 128
    %137 = vxpose.xlu0.b32.cont [15/16] 0.0, 128
    %138 = vxpose.xlu0.b32.end [16/16] 0.0, 128
    %v139 = vpop.trf.xlu0
    %v140 = vpop.trf.xlu0
    %v141 = vpop.trf.xlu0
    %v142 = vpop.trf.xlu0
    %v143 = vpop.trf.xlu0
    %v144 = vpop.trf.xlu0
    %v145 = vpop.trf.xlu0
    %v146 = vpop.trf.xlu0
    %v147 = vpop.trf.xlu0
    %v148 = vpop.trf.xlu0
    %v149 = vpop.trf.xlu0
    %v150 = vpop.trf.xlu0
    %v151 = vpop.trf.xlu0
    %v152 = vpop.trf.xlu0
    %v153 = vpop.trf.xlu0
    %v154 = vpop.trf.xlu0
    %v155 = vld [vmem:[%s79] sm:$0x1]
    %v156 = vsub.f32 %v106, %v139
    %v157 = vsub.f32 %v107, %v140
    %v158 = vsub.f32 %v108, %v141
    %v159 = vsub.f32 %v109, %v142
    %v160 = vsub.f32 %v110, %v143
    %v161 = vsub.f32 %v111, %v144
    %v162 = vsub.f32 %v112, %v145
    %v163 = vsub.f32 %v113, %v146
    %v164 = vadd.f32 %v156, 1e-06
    %v165 = vadd.f32 %v157, 1e-06
    %v166 = vadd.f32 %v158, 1e-06
    %v167 = vadd.f32 %v159, 1e-06
    %v168 = vadd.f32 %v160, 1e-06
    %v169 = vadd.f32 %v161, 1e-06
    %v170 = vadd.f32 %v162, 1e-06
    %v171 = vadd.f32 %v163, 1e-06
    %v172 = vmul.f32 %v164, %v164
    %v173 = vmul.f32 %v165, %v165
    %v174 = vmul.f32 %v166, %v166
    %v175 = vmul.f32 %v167, %v167
    %v176 = vmul.f32 %v168, %v168
    %v177 = vmul.f32 %v169, %v169
    %v178 = vmul.f32 %v170, %v170
    %v179 = vmul.f32 %v171, %v171
    %vm180 = vcmask 64512
    %v181 = vsel %vm180, %v172, 0.0
    %v182 = vsel %vm180, %v173, 0.0
    %v183 = vadd.f32 %v181, %v182
    %v184 = vsel %vm180, %v174, 0.0
    %v185 = vadd.f32 %v183, %v184
    %v186 = vsel %vm180, %v175, 0.0
    %v187 = vadd.f32 %v185, %v186
    %v188 = vsel %vm180, %v176, 0.0
    %v189 = vadd.f32 %v187, %v188
    %v190 = vsel %vm180, %v177, 0.0
    %v191 = vadd.f32 %v189, %v190
    %v192 = vsel %vm180, %v178, 0.0
    %v193 = vadd.f32 %v191, %v192
    %vm194 = vcmask 62464
    %v195 = vsel %vm194, %v179, 0.0
    %v196 = vadd.f32 %v193, %v195
    %v197 = vrot.slane %v196, 4
    %v198 = vadd.f32 %v196, %v197
    %v199 = vrot.slane %v198, 2
    %v200 = vadd.f32 %v198, %v199
    %v201 = vrot.slane %v200, 1
    %v202 = vadd.f32 %v200, %v201
    %v203 = vrsqrt.pop %v202
    %v204 = vmul.f32 %v203, %v202
    %v205 = vmul.f32 %v204, %v203
    %v206 = vmul.f32 0.5, %v205
    %v207 = vsub.f32 1.5, %v206
    %v208 = vmul.f32 %v203, %v207
    %v209 = vmul.f32 %v202, %v208
    %vm210 = vcmp.eq.f32.partialorder %v202, inf
    %v211 = vsel %vm210, %v202, %v209
    %vm212 = vcmp.eq.f32.partialorder %v202, 0.0
    %v213 = vand.u32 %v202, 2147483648
    %v214 = vsel %vm212, %v213, %v211
    %v215 = vmul.f32 %v155, 0.5
    %v216 = vmul.f32 %v215, %v202
    %v217 = vsub.f32 1.0, %v214
    %v218 = vmax.f32 %v217, 0.0
    %v219 = vsub.f32 1.0, %v155
    %v220 = vmul.f32 %v218, %v218
    %v221 = vmul.f32 %v219, %v220
    %v222 = vadd.f32 %v216, %v221
    %s223 = sadd.s32 0, 0
    %s224 = sadd.s32 %s223, 1
    %s225 = smul.u32 %s224, 8
    %p226 = scmp.gt.s32.totalorder %s225, 8
    %p227 = scmp.le.s32.totalorder %s225, 8
    // Predicated region
    $region26: #{tpu_custom_call.1} parent=1 // pred_check
      %p228 = pneg %p227
    $region27: #{tpu_custom_call.1} parent=1 // pred_check_branch
      %230 = sbr.rel (%p228) target = $region29
    $region28: #{tpu_custom_call.1} parent=1 // pred_region
      %v231 = vld [vmem:[#allocation7] sm:$0x1]
      %v232 = vadd.f32 %v231, %v222
      %vm233 = vcmask 57344
      %234 = vst.msk [vmem:[#allocation7] sm:$0x1] %vm233, %v232
    $region29: #{tpu_custom_call.1} parent=1 // pred_fallthru
      _
    // Predicated region
    $region30: #{tpu_custom_call.1} parent=1 // pred_check
      %p235 = pneg %p226
    $region31: #{tpu_custom_call.1} parent=1 // pred_check_branch
      %237 = sbr.rel (%p235) target = $region33
    $region32: #{tpu_custom_call.1} parent=1 // pred_region
      %v238 = vlaneseq
      %v239 = vand.u32 %v238, 127
      %s240 = smul.u32 %s223, 8
      %v241 = vstv %s240
      %v242 = vadd.s32 %v241, %v239
      %v243 = vld [vmem:[#allocation7] sm:$0x1]
      %vm244 = vcmp.lt.s32.totalorder %v242, 8
      %v245 = vsel %vm244, %v222, 0.0
      %v246 = vadd.f32 %v243, %v245
      %vm247 = vcmask 57344
      %248 = vst.msk [vmem:[#allocation7] sm:$0x1] %vm247, %v246
    $region33: #{tpu_custom_call.1} parent=1 // pred_fallthru
      _
    // Predicated region
    $region34: #{tpu_custom_call.1} parent=1 // pred_check
      _
    $region35: #{tpu_custom_call.1} parent=1 // pred_check_branch
      %250 = sbr.rel (0) target = $region37
    $region36: #{tpu_custom_call.1} parent=1 // pred_region
      %252 = vsyncadd [#allocation4], 0
      %s254 = sshll.u32 [#allocation7], 4
      %s255 = int_to_ptr.vmem [resolvable:$true] %s254
      %s256 = sshll.u32 %s3, 4
      %s257 = int_to_ptr.hbm [resolvable:$true] %s256
      %259 = dma.vmem_to_hbm [thread:$0]  %s255, 128, %s257, [#allocation4]
    $region37: #{tpu_custom_call.1} parent=1 // pred_fallthru
      _
    // Predicated region
    $region38: #{tpu_custom_call.1} parent=1 // pred_check
      _
    $region39: #{tpu_custom_call.1} parent=1 // pred_check_branch
      %261 = sbr.rel (0) target = $region41
    $region40: #{tpu_custom_call.1} parent=1 // pred_region
      %263 = dma.done [#allocation4], 128
    $region41: #{tpu_custom_call.1} parent=1 // pred_fallthru
      _
    %264 = vsyncpa [#allocation3], 1
    %265 = vsyncpa [#allocation6], 1
    %266 = vsyncpa [#allocation4], 1

</llo_original>
